<compile_context>
chip_gen: v5e
topology: v5e:2x2
jax: 0.10.0
libtpu: 0.0.40
codegen_flags: <defaults>
</compile_context>

<pallas_src>
import jax
import jax.numpy as jnp
from jax.experimental import pallas as pl
from jax.experimental.pallas import tpu as pltpu


# ----------------------------------------------------------------------------
# Pallas kernel: elementwise identity copy over a lane-dense (rows, LANES) tile
# ----------------------------------------------------------------------------
def _identity_kernel(x_ref, o_ref):
    o_ref[...] = x_ref[...]


_LANES = 1024                          # lane-dense: large multiple of 128
_TARGET_BLOCK_BYTES = 4 * 1024 * 1024  # ~4 MiB blocks (amortize ~0.35us/step)
_MIN_GRID_STEPS = 4                    # keep both v7x TensorCores busy
_VMEM_LIMIT_BYTES = 32 * 1024 * 1024   # 2 in + 2 out x 4 MiB = 16 MiB used


def _cdiv(a, b):
    return -(-a // b)


def _round_up(a, b):
    return _cdiv(a, b) * b


def _sublane_align(dtype):
    # Minimum second-to-last-dim tile: 8 (f32), 16 (bf16), 32 (int8).
    itemsize = jnp.dtype(dtype).itemsize
    return max(8, 32 // max(1, itemsize))


def _choose_block_rows(rows, dtype):
    itemsize = jnp.dtype(dtype).itemsize
    align = _sublane_align(dtype)
    target = max(align, (_TARGET_BLOCK_BYTES // (_LANES * itemsize)) // align * align)
    total_bytes = rows * _LANES * itemsize
    if total_bytes >= 2 * _TARGET_BLOCK_BYTES:
        # Large input: cap block size so we get >= _MIN_GRID_STEPS grid steps
        # (megacore split on v7x), but never below the aligned minimum.
        split = max(align, _round_up(_cdiv(rows, _MIN_GRID_STEPS), align))
        block_rows = min(target, split)
    else:
        block_rows = min(target, rows)
    if block_rows >= rows:
        return rows          # single block == full dim (alignment not required)
    return block_rows        # aligned block; ragged tail handled by cdiv grid


@jax.jit
def _pallas_identity(x: jax.Array) -> jax.Array:
    """Exact identity over an arbitrary-shaped waveform via a lane-dense copy."""
    orig_shape = x.shape
    dtype = x.dtype
    n = int(x.size)
    if n == 0:
        return x

    # Flatten to a lane-dense 2D slab; pad only up to the 1024-lane row width
    # (<= 1023 elements; zero in the common case).  The ragged *row* tail is
    # handled by a partial last grid block, not by padding.
    n_padded = _round_up(n, _LANES)
    flat = x.reshape(-1)
    if n_padded != n:
        flat = jnp.pad(flat, (0, n_padded - n))

    rows = n_padded // _LANES
    block_rows = _choose_block_rows(rows, dtype)
    grid = (pl.cdiv(rows, block_rows),)

    x2d = flat.reshape(rows, _LANES)

    out2d = pl.pallas_call(
        _identity_kernel,
        out_shape=jax.ShapeDtypeStruct((rows, _LANES), dtype),
        grid=grid,
        in_specs=[pl.BlockSpec((block_rows, _LANES), lambda i: (i, 0))],
        out_specs=pl.BlockSpec((block_rows, _LANES), lambda i: (i, 0)),
        compiler_params=pltpu.CompilerParams(
            dimension_semantics=("parallel",),
            vmem_limit_bytes=_VMEM_LIMIT_BYTES,
        ),
    )(x2d)

    out_flat = out2d.reshape(-1)
    if n_padded != n:
        out_flat = out_flat[:n]
    return out_flat.reshape(orig_shape)


# ----------------------------------------------------------------------------
# BaseModel: JAX counterpart of look2hear.models.base_model.BaseModel
# ----------------------------------------------------------------------------
class BaseModel:
    def __init__(self, sample_rate, in_chan=1, use_pallas_copy=True):
        self._sample_rate = sample_rate
        self._in_chan = in_chan
        # For the pure base-class identity path, `return x` is zero-cost;
        # the Pallas copy is kept (default on) as the kernel template.
        self._use_pallas_copy = use_pallas_copy

    def sample_rate(self):
        return self._sample_rate

    def forward(self, x):
        # Abstract in the reference; exposed here as a Pallas identity
        # pass-through over the (batch, in_chan, time) waveform.
        if x.ndim != 3 or x.shape[1] != self._in_chan:
            raise ValueError(
                f"expected (batch, {self._in_chan}, time) waveform, got {x.shape}"
            )
        if not self._use_pallas_copy:
            return x
        return _pallas_identity(x)

    __call__ = forward

    def get_state_dict(self):
        # BaseModel itself holds no parameters.
        return {}

    def get_model_args(self):
        return {"sample_rate": self._sample_rate, "in_chan": self._in_chan}

    def serialize(self):
        return dict(
            model_name=self.__class__.__name__,
            state_dict=self.get_state_dict(),
            model_args=self.get_model_args(),
            infos=dict(software_versions=dict(jax_version=jax.__version__)),
        )


if __name__ == "__main__":
    key = jax.random.PRNGKey(0)

    # Small synthetic waveform, (batch, in_chan, time) like PyTorch NCW.
    batch, in_chan, time = 2, 1, 2048
    x = jax.random.normal(key, (batch, in_chan, time), dtype=jnp.float32)

    model = BaseModel(sample_rate=16000, in_chan=in_chan)
    y = jax.block_until_ready(model(x))

    assert y.shape == x.shape and y.dtype == x.dtype
    assert bool(jnp.array_equal(y, x))

    # Odd-length waveform (not a multiple of any tile) — exercises the
    # <=1023-element pad + partial-block path.
    x_odd = jax.random.normal(jax.random.PRNGKey(1), (2, 1, 12345), jnp.float32)
    y_odd = jax.block_until_ready(model(x_odd))
    assert y_odd.shape == x_odd.shape and bool(jnp.array_equal(y_odd, x_odd))

    # bf16 waveform — exercises the dtype-aware sublane alignment path.
    x_bf16 = x.astype(jnp.bfloat16)
    y_bf16 = jax.block_until_ready(model(x_bf16))
    assert y_bf16.dtype == jnp.bfloat16 and bool(jnp.array_equal(y_bf16, x_bf16))

    # Zero-cost short-circuit path (review suggestion): identical result.
    model_nc = BaseModel(sample_rate=16000, in_chan=in_chan, use_pallas_copy=False)
    y_nc = jax.block_until_ready(model_nc(x))
    assert bool(jnp.array_equal(y_nc, x))

    assert model.sample_rate() == 16000
    assert model.get_model_args() == {"sample_rate": 16000, "in_chan": in_chan}

    print("KERNEL_OK")
</pallas_src>

<mosaic_0001>
module attributes {stable_mosaic.version = 11 : i64} {
  func.func @_identity_kernel(%arg0: i32, %arg1: memref<4x1024xf32, #tpu.memory_space<vmem>>, %arg2: memref<4x1024xf32, #tpu.memory_space<vmem>>) attributes {dimension_semantics = [#tpu.dimension_semantics<parallel>], iteration_bounds = array<i64: 1>, scalar_prefetch = 0 : i64, scratch_operands = 0 : i64, tpu.core_type = #tpu.core_type<tc>, window_params = [{transform_indices = @transform_0, window_bounds = array<i64: 4, 1024>}, {transform_indices = @transform_1, window_bounds = array<i64: 4, 1024>}]} {
    %c0 = arith.constant 0 : index
    %c0_0 = arith.constant 0 : index
    %0 = vector.load %arg1[%c0, %c0_0] : memref<4x1024xf32, #tpu.memory_space<vmem>>, vector<4x1024xf32>
    %c0_1 = arith.constant 0 : index
    %c0_2 = arith.constant 0 : index
    %1 = vector.load %arg2[%c0_1, %c0_2] : memref<4x1024xf32, #tpu.memory_space<vmem>>, vector<4x1024xf32>
    tpu.vector_store %arg2[%c0_1, %c0_2], %0 {strides = array<i32>} : memref<4x1024xf32, #tpu.memory_space<vmem>>, vector<4x1024xf32>,
    return
  }
  func.func @transform_0(%arg0: i32) -> (i32, i32) {
    %c0_i32 = arith.constant 0 : i32
    %c0_i32_0 = arith.constant 0 : i32
    return %arg0, %c0_i32 : i32, i32
  }
  func.func @transform_1(%arg0: i32) -> (i32, i32) {
    %c0_i32 = arith.constant 0 : i32
    %c0_i32_0 = arith.constant 0 : i32
    return %arg0, %c0_i32 : i32, i32
  }
}

</mosaic_0001>

<llo_original>
// kernel: _pallas_identity.1
$region0: #{_pallas_identity.1}
  #allocation0 [shape = 'u32[]', space=smem, size = 0x4, offset = 0x4, fixed_abs, tag = 'smem constant byte address 0x4 - core index']
  #allocation1 [shape = 'u32[72,128]{1,0:T(1,128)}', space=vmem, size = 0x9000, scoped, tag = 'internal scratch']
  %s0 = inlined_call_operand.vmem [shape: f32[4,1024], index: 0, kind: input, shape index: {}]
  %s1 = inlined_call_operand.vmem [shape: f32[4,1024], index: 1, kind: output, shape index: {}]
  %s2 = sld [smem:[#allocation0]]
  $region14: #{_pallas_identity.1} parent=0
    _
  %s4 = ssub.s32 1, %s2
  %s5 = scalar_select 0, %s4, %s2
  // Predicated region
  $region2: #{_pallas_identity.1} parent=0 // pred_check
    _
  $region3: #{_pallas_identity.1} parent=0 // pred_check_branch
    %7 = sbr.rel (0) target = $region5
  $region4: #{_pallas_identity.1} parent=0 // pred_region
    _
  $region5: #{_pallas_identity.1} parent=0 // pred_fallthru
    _
  %v8 = vld [vmem:[%s0] sm:$0xff]
  %v9 = vld [vmem:[%s0 + $0x8] sm:$0xff]
  %v10 = vld [vmem:[%s0 + $0x10] sm:$0xff]
  %v11 = vld [vmem:[%s0 + $0x18] sm:$0xff]
  %12 = vst [vmem:[%s1] sm:$0xff] %v8
  %13 = vst [vmem:[%s1 + $0x8] sm:$0xff] %v9
  %14 = vst [vmem:[%s1 + $0x10] sm:$0xff] %v10
  %15 = vst [vmem:[%s1 + $0x18] sm:$0xff] %v11
  // Predicated region
  $region6: #{_pallas_identity.1} parent=0 // pred_check
    _
  $region7: #{_pallas_identity.1} parent=0 // pred_check_branch
    %17 = sbr.rel (0) target = $region9
  $region8: #{_pallas_identity.1} parent=0 // pred_region
    _
  $region9: #{_pallas_identity.1} parent=0 // pred_fallthru
    _
  // Predicated region
  $region10: #{_pallas_identity.1} parent=0 // pred_check
    _
  $region11: #{_pallas_identity.1} parent=0 // pred_check_branch
    %19 = sbr.rel (0) target = $region13
  $region12: #{_pallas_identity.1} parent=0 // pred_region
    _
  $region13: #{_pallas_identity.1} parent=0 // pred_fallthru
    _

</llo_original>
